<compile_context>
chip_gen: v6e
topology: v6e:2x2x1
jax: 0.10.0
libtpu: 0.0.40
codegen_flags: <defaults>
</compile_context>

<pallas_src>
import functools

import jax
import jax.numpy as jnp
from jax import lax
from jax.experimental import pallas as pl
from jax.experimental.pallas import tpu as pltpu


def _round_up(x, m):
    return (x + m - 1) // m * m


def _mlp_kernel(x_ref, w1_ref, b1_ref, w2_ref, b2_ref, w3_ref, b3_ref, o_ref,
                *, final_as_reduce, matmul_dtype, mask_tail, total_rows,
                block_rows):
    """Fused 3-layer MLP, computed transposed (batch on the lane axis)."""
    md = matmul_dtype

    x = x_ref[...]                                         # (tile_b, F) f32
    if mask_tail:
        # Ragged last tile: zero out-of-range rows so stale-VMEM garbage never
        # flows through the matmuls.  (Their output lanes are out-of-bounds on
        # the writeback anyway; this is cheap insurance, one VPU select.)
        row = pl.program_id(0) * block_rows + lax.broadcasted_iota(
            jnp.int32, (block_rows, 1), 0)
        x = jnp.where(row < total_rows, x, 0.0)

    # Layer 1: h1[h, b] = sum_f w1[h, f] * x[b, f]  (torch Linear layout, no
    # weight transpose needed).  x is transposed in f32 (one small XLU op on
    # VMEM-resident data), MXU operands are cast to `md`, accumulate in f32.
    xt = x.T                                               # (F, tile_b)
    h1 = jnp.dot(w1_ref[...].astype(md), xt.astype(md),
                 preferred_element_type=jnp.float32)
    h1 = jnp.maximum(h1 + b1_ref[...], 0.0)                # (H1, tile_b) f32

    # Layer 2.
    h2 = jnp.dot(w2_ref[...].astype(md), h1.astype(md),
                 preferred_element_type=jnp.float32)
    h2 = jnp.maximum(h2 + b2_ref[...], 0.0)                # (H2, tile_b) f32

    if final_as_reduce:
        # output_dim == 1: w3 arrives as an (H2, 1) column.  A matmul here
        # would use one useful MXU sublane, so do a VPU multiply + sublane
        # reduce instead.  Result (1, tile_b) is lane-dense.
        y = jnp.sum(h2 * w3_ref[...], axis=0, keepdims=True) + b3_ref[...]
    else:
        # General output_dim: (O, H2) @ (H2, tile_b) -> (O, tile_b).
        y = jnp.dot(w3_ref[...].astype(md), h2.astype(md),
                    preferred_element_type=jnp.float32) + b3_ref[...]

    o_ref[...] = y.astype(o_ref.dtype)                     # lane-dense store


def _const_spec(shape):
    """Constant-index block: fetched once, single VMEM buffer."""
    idx = lambda i: (0,) * len(shape)
    try:
        return pl.BlockSpec(shape, idx, pipeline_mode=pl.Buffered(1))
    except TypeError:   # older jax without pipeline_mode kwarg
        return pl.BlockSpec(shape, idx)


@functools.partial(jax.jit, static_argnames=("tile_b", "matmul_dtype"))
def reg_dnn_forward(x, params, *, tile_b=None, matmul_dtype=jnp.bfloat16):
    """Forward pass of RegDNN's MLP as one fused Pallas kernel.

    x: [B, F] float32
    params (torch nn.Linear layout): w1 [H1,F], b1 [H1], w2 [H2,H1], b2 [H2],
                                     w3 [O,H2],  b3 [O]
    returns: [B, O] float32
    """
    B, F = x.shape
    H1 = params["w1"].shape[0]
    H2 = params["w2"].shape[0]
    O = params["w3"].shape[0]

    # ---- batch tiling: batch lives on the lane axis of the output ---------
    if tile_b is None:
        if B <= 128:
            tile_b = B                       # single fat tile, grid=(1,)
        else:
            # >=2 even tiles (both v7x TCs + DMA/compute overlap), each a
            # multiple of 128 lanes, capped at 1024 rows (fewest fat steps).
            n_tiles = max(2, -(-B // 1024))
            tile_b = _round_up(-(-B // n_tiles), 128)
    tile_b = max(1, int(tile_b))
    if tile_b < B:
        tile_b = _round_up(tile_b, 128)      # multi-tile => lane dim % 128 == 0
    if tile_b >= B:
        tile_b = B                           # single tile: full-extent block
    num_tiles = pl.cdiv(B, tile_b)           # no wrapper-side padding of x
    ragged = (B % tile_b) != 0

    # ---- final-layer layout (lane-dense output, no broadcast) -------------
    final_as_reduce = (O == 1)
    if final_as_reduce:
        w3_arg = params["w3"].reshape(H2, 1)     # (1,H2) -> (H2,1), same data
        b3_arg = params["b3"].reshape(1, 1)
        o_rows = 1
    else:
        w3_arg = params["w3"]                    # (O, H2)
        b3_arg = params["b3"].reshape(O, 1)
        o_rows = O
    b1_arg = params["b1"].reshape(H1, 1)
    b2_arg = params["b2"].reshape(H2, 1)

    in_specs = [
        pl.BlockSpec((tile_b, F), lambda i: (i, 0)),     # x, tiled over batch
        _const_spec((H1, F)), _const_spec((H1, 1)),
        _const_spec((H2, H1)), _const_spec((H2, 1)),
        _const_spec(w3_arg.shape), _const_spec(b3_arg.shape),
    ]
    out_specs = pl.BlockSpec((o_rows, tile_b), lambda i: (0, i))

    # ---- scoped VMEM: only raise it when needed, never past the chip ------
    w_bytes = 4 * (H1 * F + H1 + H2 * H1 + H2 + w3_arg.size + b3_arg.size)
    io_bytes = 4 * (2 * tile_b * F + 2 * o_rows * tile_b)   # double-buffered x/out
    act_bytes = 4 * 2 * tile_b * (H1 + H2)                  # intermediates (+ cast slack)
    vmem_est = int(1.5 * (w_bytes + io_bytes + act_bytes))
    vmem_limit = None
    if vmem_est > 16 * 1024 * 1024:                         # v5e scoped default
        try:
            cap = int(getattr(pltpu.get_tpu_info(), "vmem_capacity_bytes",
                              64 * 1024 * 1024))
        except Exception:
            cap = 64 * 1024 * 1024                          # v7x physical size
        vmem_limit = min(vmem_est, cap * 3 // 4)            # leave headroom

    kernel = functools.partial(
        _mlp_kernel,
        final_as_reduce=final_as_reduce,
        matmul_dtype=matmul_dtype,
        mask_tail=ragged,
        total_rows=B,
        block_rows=tile_b,
    )

    out = pl.pallas_call(
        kernel,
        out_shape=jax.ShapeDtypeStruct((o_rows, B), jnp.float32),
        grid_spec=pltpu.PrefetchScalarGridSpec(
            num_scalar_prefetch=0,
            grid=(num_tiles,),
            in_specs=in_specs,
            out_specs=out_specs,
        ),
        compiler_params=pltpu.CompilerParams(
            dimension_semantics=("parallel",),
            vmem_limit_bytes=vmem_limit,
        ),
    )(x, params["w1"], b1_arg, params["w2"], b2_arg, w3_arg, b3_arg)

    if final_as_reduce:
        return out.reshape(B, 1)     # (1, B) -> (B, 1): pure reshape, no copy
    return out.T                     # (O, B) -> (B, O): tiny wrapper transpose


def init_params(key, num_features, hidden1, hidden2, output_dim):
    """Deterministic init, torch nn.Linear layout: W [out,in], b [out]."""
    ks = jax.random.split(key, 6)

    def _uniform(k, shape, fan_in):
        bound = 1.0 / jnp.sqrt(float(fan_in))
        return jax.random.uniform(k, shape, jnp.float32, -bound, bound)

    return {
        "w1": _uniform(ks[0], (hidden1, num_features), num_features),
        "b1": _uniform(ks[1], (hidden1,), num_features),
        "w2": _uniform(ks[2], (hidden2, hidden1), hidden1),
        "b2": _uniform(ks[3], (hidden2,), hidden1),
        "w3": _uniform(ks[4], (output_dim, hidden2), hidden2),
        "b3": _uniform(ks[5], (output_dim,), hidden2),
    }


def _reference_forward(x, params):
    h1 = jnp.maximum(x @ params["w1"].T + params["b1"], 0.0)
    h2 = jnp.maximum(h1 @ params["w2"].T + params["b2"], 0.0)
    return h2 @ params["w3"].T + params["b3"]


if __name__ == "__main__":
    key = jax.random.PRNGKey(0)
    k_x, k_p, k_x2, k_p3 = jax.random.split(key, 4)

    batch = 64          # mini-batch of samples
    num_features = 16   # len(self.features)
    hidden1 = 32
    hidden2 = 32
    output_dim = 1

    x = jax.random.normal(k_x, (batch, num_features), dtype=jnp.float32)
    params = init_params(k_p, num_features, hidden1, hidden2, output_dim)
    y_ref = _reference_forward(x, params)

    # 1) Exact-math check: f32 MXU operands, single fat tile (grid=(1,)).
    y32 = jax.block_until_ready(reg_dnn_forward(x, params, matmul_dtype=jnp.float32))
    assert y32.shape == (batch, output_dim)
    assert jnp.allclose(y32, y_ref, atol=1e-4, rtol=1e-4), "f32 mismatch vs reference"

    # 2) Default path: bf16 MXU operands with f32 accumulation -> looser tol.
    ybf = jax.block_until_ready(reg_dnn_forward(x, params))
    assert jnp.allclose(ybf, y_ref, atol=5e-2, rtol=5e-2), "bf16 mismatch vs reference"

    # 3) Multi-tile ragged batch, no wrapper pad (B=200 -> tile_b=128, grid=(2,)).
    x2 = jax.random.normal(k_x2, (200, num_features), dtype=jnp.float32)
    y2 = jax.block_until_ready(reg_dnn_forward(x2, params, matmul_dtype=jnp.float32))
    assert y2.shape == (200, 1)
    assert jnp.allclose(y2, _reference_forward(x2, params), atol=1e-4, rtol=1e-4), \
        "mismatch vs reference (ragged multi-tile)"

    # 4) General output_dim > 1 (MXU final layer, transposed lane-dense store).
    params3 = init_params(k_p3, num_features, hidden1, hidden2, 3)
    y3 = jax.block_until_ready(reg_dnn_forward(x, params3, matmul_dtype=jnp.float32))
    assert y3.shape == (batch, 3)
    assert jnp.allclose(y3, _reference_forward(x, params3), atol=1e-4, rtol=1e-4), \
        "mismatch vs reference (output_dim=3)"

    print("KERNEL_OK")
</pallas_src>

<mosaic_0001>
module attributes {stable_mosaic.version = 11 : i64} {
  func.func @_mlp_kernel(%arg0: i32, %arg1: memref<64x16xf32, #tpu.memory_space<vmem>>, %arg2: memref<32x16xf32, #tpu.memory_space<vmem>>, %arg3: memref<32x1xf32, #tpu.memory_space<vmem>>, %arg4: memref<32x32xf32, #tpu.memory_space<vmem>>, %arg5: memref<32x1xf32, #tpu.memory_space<vmem>>, %arg6: memref<32x1xf32, #tpu.memory_space<vmem>>, %arg7: memref<1x1xf32, #tpu.memory_space<vmem>>, %arg8: memref<1x64xf32, #tpu.memory_space<vmem>>) attributes {dimension_semantics = [#tpu.dimension_semantics<parallel>], iteration_bounds = array<i64: 1>, scalar_prefetch = 0 : i64, scratch_operands = 0 : i64, tpu.core_type = #tpu.core_type<tc>, window_params = [{transform_indices = @transform_0, window_bounds = array<i64: 64, 16>}, {pipeline_mode = #tpu.pipeline_mode<synchronous>, transform_indices = @transform_1, window_bounds = array<i64: 32, 16>}, {pipeline_mode = #tpu.pipeline_mode<synchronous>, transform_indices = @transform_2, window_bounds = array<i64: 32, 1>}, {pipeline_mode = #tpu.pipeline_mode<synchronous>, transform_indices = @transform_3, window_bounds = array<i64: 32, 32>}, {pipeline_mode = #tpu.pipeline_mode<synchronous>, transform_indices = @transform_4, window_bounds = array<i64: 32, 1>}, {pipeline_mode = #tpu.pipeline_mode<synchronous>, transform_indices = @transform_5, window_bounds = array<i64: 32, 1>}, {pipeline_mode = #tpu.pipeline_mode<synchronous>, transform_indices = @transform_6, window_bounds = array<i64: 1, 1>}, {transform_indices = @transform_7, window_bounds = array<i64: 1, 64>}]} {
    %c0 = arith.constant 0 : index
    %c0_0 = arith.constant 0 : index
    %0 = vector.load %arg1[%c0, %c0_0] : memref<64x16xf32, #tpu.memory_space<vmem>>, vector<64x16xf32>
    %1 = tpu.transpose %0, [1, 0] : vector<64x16xf32> -> vector<16x64xf32>
    %c0_1 = arith.constant 0 : index
    %c0_2 = arith.constant 0 : index
    %2 = vector.load %arg2[%c0_1, %c0_2] : memref<32x16xf32, #tpu.memory_space<vmem>>, vector<32x16xf32>
    %cst = arith.constant dense<0.000000e+00> : vector<32x64xf32>
    %3 = tpu.matmul %2, %1, %cst {dimension_numbers = #tpu.dot_dimension_numbers<[1], [0], [0], [1], [0, 0, 1, 1], [], []>} : vector<32x16xf32>, vector<16x64xf32>, vector<32x64xf32> -> vector<32x64xf32>
    %c0_3 = arith.constant 0 : index
    %c0_4 = arith.constant 0 : index
    %4 = vector.load %arg3[%c0_3, %c0_4] : memref<32x1xf32, #tpu.memory_space<vmem>>, vector<32x1xf32>
    %5 = vector.broadcast %4 : vector<32x1xf32> to vector<32x64xf32>
    %6 = arith.addf %3, %5 : vector<32x64xf32>
    %cst_5 = arith.constant 0.000000e+00 : f32
    %7 = vector.broadcast %cst_5 : f32 to vector<32x64xf32>
    %8 = arith.maximumf %6, %7 : vector<32x64xf32>
    %c0_6 = arith.constant 0 : index
    %c0_7 = arith.constant 0 : index
    %9 = vector.load %arg4[%c0_6, %c0_7] : memref<32x32xf32, #tpu.memory_space<vmem>>, vector<32x32xf32>
    %cst_8 = arith.constant dense<0.000000e+00> : vector<32x64xf32>
    %10 = tpu.matmul %9, %8, %cst_8 {dimension_numbers = #tpu.dot_dimension_numbers<[1], [0], [0], [1], [0, 0, 1, 1], [], []>} : vector<32x32xf32>, vector<32x64xf32>, vector<32x64xf32> -> vector<32x64xf32>
    %c0_9 = arith.constant 0 : index
    %c0_10 = arith.constant 0 : index
    %11 = vector.load %arg5[%c0_9, %c0_10] : memref<32x1xf32, #tpu.memory_space<vmem>>, vector<32x1xf32>
    %12 = vector.broadcast %11 : vector<32x1xf32> to vector<32x64xf32>
    %13 = arith.addf %10, %12 : vector<32x64xf32>
    %cst_11 = arith.constant 0.000000e+00 : f32
    %14 = vector.broadcast %cst_11 : f32 to vector<32x64xf32>
    %15 = arith.maximumf %13, %14 : vector<32x64xf32>
    %c0_12 = arith.constant 0 : index
    %c0_13 = arith.constant 0 : index
    %16 = vector.load %arg6[%c0_12, %c0_13] : memref<32x1xf32, #tpu.memory_space<vmem>>, vector<32x1xf32>
    %17 = vector.broadcast %16 : vector<32x1xf32> to vector<32x64xf32>
    %18 = arith.mulf %15, %17 : vector<32x64xf32>
    %cst_14 = arith.constant dense<0.000000e+00> : vector<64xf32>
    %19 = vector.multi_reduction <add>, %18, %cst_14 [0] : vector<32x64xf32> to vector<64xf32>
    %20 = vector.shape_cast %19 : vector<64xf32> to vector<1x64xf32>
    %c0_15 = arith.constant 0 : index
    %c0_16 = arith.constant 0 : index
    %21 = vector.load %arg7[%c0_15, %c0_16] : memref<1x1xf32, #tpu.memory_space<vmem>>, vector<1x1xf32>
    %22 = vector.broadcast %21 : vector<1x1xf32> to vector<1x64xf32>
    %23 = arith.addf %20, %22 : vector<1x64xf32>
    %c0_17 = arith.constant 0 : index
    %c0_18 = arith.constant 0 : index
    %24 = vector.load %arg8[%c0_17, %c0_18] : memref<1x64xf32, #tpu.memory_space<vmem>>, vector<1x64xf32>
    tpu.vector_store %arg8[%c0_17, %c0_18], %23 {strides = array<i32>} : memref<1x64xf32, #tpu.memory_space<vmem>>, vector<1x64xf32>,
    return
  }
  func.func @transform_0(%arg0: i32) -> (i32, i32) {
    %c0_i32 = arith.constant 0 : i32
    %c0_i32_0 = arith.constant 0 : i32
    return %arg0, %c0_i32 : i32, i32
  }
  func.func @transform_1(%arg0: i32) -> (i32, i32) {
    %c0_i32 = arith.constant 0 : i32
    %c0_i32_0 = arith.constant 0 : i32
    %c0_i32_1 = arith.constant 0 : i32
    return %c0_i32, %c0_i32_0 : i32, i32
  }
  func.func @transform_2(%arg0: i32) -> (i32, i32) {
    %c0_i32 = arith.constant 0 : i32
    %c0_i32_0 = arith.constant 0 : i32
    %c0_i32_1 = arith.constant 0 : i32
    return %c0_i32, %c0_i32_0 : i32, i32
  }
  func.func @transform_3(%arg0: i32) -> (i32, i32) {
    %c0_i32 = arith.constant 0 : i32
    %c0_i32_0 = arith.constant 0 : i32
    %c0_i32_1 = arith.constant 0 : i32
    return %c0_i32, %c0_i32_0 : i32, i32
  }
  func.func @transform_4(%arg0: i32) -> (i32, i32) {
    %c0_i32 = arith.constant 0 : i32
    %c0_i32_0 = arith.constant 0 : i32
    %c0_i32_1 = arith.constant 0 : i32
    return %c0_i32, %c0_i32_0 : i32, i32
  }
  func.func @transform_5(%arg0: i32) -> (i32, i32) {
    %c0_i32 = arith.constant 0 : i32
    %c0_i32_0 = arith.constant 0 : i32
    %c0_i32_1 = arith.constant 0 : i32
    return %c0_i32, %c0_i32_0 : i32, i32
  }
  func.func @transform_6(%arg0: i32) -> (i32, i32) {
    %c0_i32 = arith.constant 0 : i32
    %c0_i32_0 = arith.constant 0 : i32
    %c0_i32_1 = arith.constant 0 : i32
    return %c0_i32, %c0_i32_0 : i32, i32
  }
  func.func @transform_7(%arg0: i32) -> (i32, i32) {
    %c0_i32 = arith.constant 0 : i32
    %c0_i32_0 = arith.constant 0 : i32
    return %c0_i32, %arg0 : i32, i32
  }
}

</mosaic_0001>

<llo_original>
// kernel: reg_dnn_forward.1
$region0: #{reg_dnn_forward.1}
  #allocation0 [shape = 'u32[]', space=smem, size = 0x4, offset = 0x4, fixed_abs, tag = 'smem constant byte address 0x4 - core index']
  #allocation1 [shape = 'u32[144,128]{1,0:T(1,128)}', space=vmem, size = 0x12000, scoped, tag = 'internal scratch']
  #allocation2 [shape = 'f32[1,1]{1,0:T(1,128)S(1)}', space=vmem, size = 0x200, scoped, tag = 'scoped memory for reg_dnn_forward.1']
  %s0 = inlined_call_operand.vmem [shape: f32[64,16], index: 0, kind: input, shape index: {}]
  %s1 = inlined_call_operand.vmem [shape: f32[32,16], index: 1, kind: input, shape index: {}]
  %s2 = inlined_call_operand.vmem [shape: f32[32,1], index: 2, kind: input, shape index: {}]
  %s3 = inlined_call_operand.vmem [shape: f32[32,32], index: 3, kind: input, shape index: {}]
  %s4 = inlined_call_operand.vmem [shape: f32[32,1], index: 4, kind: input, shape index: {}]
  %s5 = inlined_call_operand.vmem [shape: f32[32,1], index: 5, kind: input, shape index: {}]
  %s6 = inlined_call_operand.<no memory space> [shape: f32[1,1], index: 6, kind: input, shape index: {}]
  %s7 = inlined_call_operand.hbm [shape: f32[1,64], index: 7, kind: output, shape index: {}]
  %s8 = sld [smem:[#allocation0]]
  $region38: #{reg_dnn_forward.1} parent=0
    _
  %s10 = ssub.s32 1, %s8
  %s11 = scalar_select 0, %s10, %s8
  %v12 = vstv %s6
  %13 = vst [vmem:[#allocation2] sm:$0x1] %v12
  $region1: #{reg_dnn_forward.1} parent=0
    #allocation3 [shape = 'u8[512]{0}', space=vmem, size = 0x400, scoped, tag = 'output window, operand 0, single buffered']
    #allocation4 [shape = 's32[1]{0}', space=sflag, size = 0x4, scoped, tag = 'scoped memory for reg_dnn_forward.1']
    %14 = vsyncpa [#allocation4], 0
    // Predicated region
    $region2: #{reg_dnn_forward.1} parent=1 // pred_check
      _
    $region3: #{reg_dnn_forward.1} parent=1 // pred_check_branch
      %16 = sbr.rel (0) target = $region5
    $region4: #{reg_dnn_forward.1} parent=1 // pred_region
      _
    $region5: #{reg_dnn_forward.1} parent=1 // pred_fallthru
      _
    // Predicated region
    $region6: #{reg_dnn_forward.1} parent=1 // pred_check
      _
    $region7: #{reg_dnn_forward.1} parent=1 // pred_check_branch
      %18 = sbr.rel (0) target = $region9
    $region8: #{reg_dnn_forward.1} parent=1 // pred_region
      _
    $region9: #{reg_dnn_forward.1} parent=1 // pred_fallthru
      _
    // Predicated region
    $region10: #{reg_dnn_forward.1} parent=1 // pred_check
      _
    $region11: #{reg_dnn_forward.1} parent=1 // pred_check_branch
      %20 = sbr.rel (0) target = $region13
    $region12: #{reg_dnn_forward.1} parent=1 // pred_region
      _
    $region13: #{reg_dnn_forward.1} parent=1 // pred_fallthru
      _
    // Predicated region
    $region14: #{reg_dnn_forward.1} parent=1 // pred_check
      _
    $region15: #{reg_dnn_forward.1} parent=1 // pred_check_branch
      %22 = sbr.rel (0) target = $region17
    $region16: #{reg_dnn_forward.1} parent=1 // pred_region
      _
    $region17: #{reg_dnn_forward.1} parent=1 // pred_fallthru
      _
    // Predicated region
    $region18: #{reg_dnn_forward.1} parent=1 // pred_check
      _
    $region19: #{reg_dnn_forward.1} parent=1 // pred_check_branch
      %24 = sbr.rel (0) target = $region21
    $region20: #{reg_dnn_forward.1} parent=1 // pred_region
      _
    $region21: #{reg_dnn_forward.1} parent=1 // pred_fallthru
      _
    // Predicated region
    $region22: #{reg_dnn_forward.1} parent=1 // pred_check
      _
    $region23: #{reg_dnn_forward.1} parent=1 // pred_check_branch
      %26 = sbr.rel (0) target = $region25
    $region24: #{reg_dnn_forward.1} parent=1 // pred_region
      _
    $region25: #{reg_dnn_forward.1} parent=1 // pred_fallthru
      _
    // Predicated region
    $region26: #{reg_dnn_forward.1} parent=1 // pred_check
      _
    $region27: #{reg_dnn_forward.1} parent=1 // pred_check_branch
      %28 = sbr.rel (0) target = $region29
    $region28: #{reg_dnn_forward.1} parent=1 // pred_region
      _
    $region29: #{reg_dnn_forward.1} parent=1 // pred_fallthru
      _
    %v29 = vld [vmem:[%s0] sm:$0xff]
    %v30 = vld [vmem:[%s0 + $0x8] sm:$0xff]
    %v31 = vld [vmem:[%s0 + $0x10] sm:$0xff]
    %v32 = vld [vmem:[%s0 + $0x18] sm:$0xff]
    %v33 = vld [vmem:[%s0 + $0x20] sm:$0xff]
    %v34 = vld [vmem:[%s0 + $0x28] sm:$0xff]
    %v35 = vld [vmem:[%s0 + $0x30] sm:$0xff]
    %v36 = vld [vmem:[%s0 + $0x38] sm:$0xff]
    %v37 = vld [vmem:[%s1] sm:$0xff]
    %v38 = vld [vmem:[%s1 + $0x8] sm:$0xff]
    %v39 = vld [vmem:[%s1 + $0x10] sm:$0xff]
    %v40 = vld [vmem:[%s1 + $0x18] sm:$0xff]
    %v41 = vld [vmem:[%s2] sm:$0xff]
    %v42 = vld [vmem:[%s2 + $0x8] sm:$0xff]
    %v43 = vld [vmem:[%s2 + $0x10] sm:$0xff]
    %v44 = vld [vmem:[%s2 + $0x18] sm:$0xff]
    %46 = vset.pattern.permute.xlu0 0
    %47 = vperm.xlu0 %46, %v41
    %v48 = vpop.permute.xlu0 %47
    %51 = vset.pattern.permute.xlu0 0
    %52 = vperm.xlu0 %51, %v42
    %v53 = vpop.permute.xlu0 %52
    %56 = vset.pattern.permute.xlu0 0
    %57 = vperm.xlu0 %56, %v43
    %v58 = vpop.permute.xlu0 %57
    %61 = vset.pattern.permute.xlu0 0
    %62 = vperm.xlu0 %61, %v44
    %v63 = vpop.permute.xlu0 %62
    %vm65 = vcmask 130048
    %v67 = vsel %vm65, %v37, 0
    %v70 = vsel %vm65, %v38, 0
    %v73 = vsel %vm65, %v39, 0
    %v76 = vsel %vm65, %v40, 0
    %v79 = vsel %vm65, %v29, 0
    %v82 = vsel %vm65, %v30, 0
    %v85 = vsel %vm65, %v31, 0
    %v88 = vsel %vm65, %v32, 0
    %v91 = vsel %vm65, %v33, 0
    %v94 = vsel %vm65, %v34, 0
    %v97 = vsel %vm65, %v35, 0
    %v100 = vsel %vm65, %v36, 0
    %102 = vmatprep.subr.mxu0 0.0
    %103 = vmatpush1.xpose.msra.mxu0 0.0
    %104 = vmatprep.subr.mxu0 0.0
    %105 = vmatpush1.xpose.msra.mxu0 0.0
    %106 = vmatprep.subr.mxu0 0.0
    %107 = vmatpush1.xpose.msra.mxu0 0.0
    %108 = vmatprep.subr.mxu0 0.0
    %109 = vmatpush1.xpose.msra.mxu0 0.0
    %110 = vmatprep.subr.mxu0 0.0
    %111 = vmatpush1.xpose.msra.mxu0 0.0
    %112 = vmatprep.subr.mxu0 0.0
    %113 = vmatpush1.xpose.msra.mxu0 0.0
    %114 = vmatprep.subr.mxu0 0.0
    %115 = vmatpush1.xpose.msra.mxu0 0.0
    %116 = vmatprep.subr.mxu0 0.0
    %117 = vmatpush1.xpose.msra.mxu0 0.0
    %118 = vmatprep.subr.mxu0 0.0
    %119 = vmatpush1.xpose.msra.mxu0 %v100
    %120 = vmatprep.subr.mxu0 0.0
    %121 = vmatpush1.xpose.msra.mxu0 %v97
    %122 = vmatprep.subr.mxu0 0.0
    %123 = vmatpush1.xpose.msra.mxu0 %v94
    %124 = vmatprep.subr.mxu0 0.0
    %125 = vmatpush1.xpose.msra.mxu0 %v91
    %126 = vmatprep.subr.mxu0 0.0
    %127 = vmatpush1.xpose.msra.mxu0 %v88
    %128 = vmatprep.subr.mxu0 0.0
    %129 = vmatpush1.xpose.msra.mxu0 %v85
    %130 = vmatprep.subr.mxu0 0.0
    %131 = vmatpush1.xpose.msra.mxu0 %v82
    %132 = vmatprep.subr.mxu0 0.0
    %133 = vmatpush1.xpose.msra.mxu0 %v79
    %134 = vmatprep.subr.mxu0 0.0
    %135 = vmatpush2.xpose.msra.mxu0 0.0
    %136 = vmatprep.subr.mxu0 0.0
    %137 = vmatpush2.xpose.msra.mxu0 0.0
    %138 = vmatprep.subr.mxu0 0.0
    %139 = vmatpush2.xpose.msra.mxu0 0.0
    %140 = vmatprep.subr.mxu0 0.0
    %141 = vmatpush2.xpose.msra.mxu0 0.0
    %142 = vmatprep.subr.mxu0 0.0
    %143 = vmatpush2.xpose.msra.mxu0 0.0
    %144 = vmatprep.subr.mxu0 0.0
    %145 = vmatpush2.xpose.msra.mxu0 0.0
    %146 = vmatprep.subr.mxu0 0.0
    %147 = vmatpush2.xpose.msra.mxu0 0.0
    %148 = vmatprep.subr.mxu0 0.0
    %149 = vmatpush2.xpose.msra.mxu0 0.0
    %150 = vmatprep.subr.mxu0 0.0
    %151 = vmatpush2.xpose.msra.mxu0 0.0
    %152 = vmatprep.subr.mxu0 0.0
    %153 = vmatpush2.xpose.msra.mxu0 0.0
    %154 = vmatprep.subr.mxu0 0.0
    %155 = vmatpush2.xpose.msra.mxu0 0.0
    %156 = vmatprep.subr.mxu0 0.0
    %157 = vmatpush2.xpose.msra.mxu0 0.0
    %158 = vmatprep.subr.mxu0 0.0
    %159 = vmatpush2.xpose.msra.mxu0 0.0
    %160 = vmatprep.subr.mxu0 0.0
    %161 = vmatpush2.xpose.msra.mxu0 0.0
    %162 = vmatprep.subr.mxu0 0.0
    %163 = vmatpush2.xpose.msra.mxu0 0.0
    %164 = vmatprep.subr.mxu0 0.0
    %165 = vmatpush2.xpose.msra.mxu0 0.0
    %166 = vmatprep.mubr.f32.mxu0 0.0
    %167 = vmatmul.mubr.f32.gmra.mxu0 %v67
    %v168 = vpop.f32.mrf.mxu0
    %v169 = vadd.f32 %v48, %v168
    %v170 = vpop.f32.mrf.mxu0
    %171 = vmatprep.mubr.f32.mxu0 0.0
    %172 = vmatmul.mubr.f32.gmra.mxu0 %v70
    %v173 = vpop.f32.mrf.mxu0
    %v174 = vadd.f32 %v53, %v173
    %v175 = vpop.f32.mrf.mxu0
    %176 = vmatprep.mubr.f32.mxu0 0.0
    %177 = vmatmul.mubr.f32.gmra.mxu0 %v73
    %v178 = vpop.f32.mrf.mxu0
    %v179 = vadd.f32 %v58, %v178
    %v180 = vpop.f32.mrf.mxu0
    %181 = vmatprep.mubr.f32.mxu0 0.0
    %182 = vmatmul.mubr.f32.gmra.mxu0 %v76
    %v183 = vpop.f32.mrf.mxu0
    %v184 = vadd.f32 %v63, %v183
    %v185 = vpop.f32.mrf.mxu0
    %186 = vdwg.mxu0
    %v187 = vmax.f32 %v169, 0.0
    %v188 = vmax.f32 %v174, 0.0
    %v189 = vmax.f32 %v179, 0.0
    %v190 = vmax.f32 %v184, 0.0
    %v191 = vld [vmem:[%s3] sm:$0xff]
    %v192 = vld [vmem:[%s3 + $0x8] sm:$0xff]
    %v193 = vld [vmem:[%s3 + $0x10] sm:$0xff]
    %v194 = vld [vmem:[%s3 + $0x18] sm:$0xff]
    %v195 = vld [vmem:[%s4] sm:$0xff]
    %v196 = vld [vmem:[%s4 + $0x8] sm:$0xff]
    %v197 = vld [vmem:[%s4 + $0x10] sm:$0xff]
    %v198 = vld [vmem:[%s4 + $0x18] sm:$0xff]
    %200 = vset.pattern.permute.xlu0 0
    %201 = vperm.xlu0 %200, %v195
    %v202 = vpop.permute.xlu0 %201
    %205 = vset.pattern.permute.xlu0 0
    %206 = vperm.xlu0 %205, %v196
    %v207 = vpop.permute.xlu0 %206
    %210 = vset.pattern.permute.xlu0 0
    %211 = vperm.xlu0 %210, %v197
    %v212 = vpop.permute.xlu0 %211
    %215 = vset.pattern.permute.xlu0 0
    %216 = vperm.xlu0 %215, %v198
    %v217 = vpop.permute.xlu0 %216
    %vm219 = vcmask 261120
    %v221 = vsel %vm219, %v191, 0
    %v224 = vsel %vm219, %v192, 0
    %v227 = vsel %vm219, %v193, 0
    %v230 = vsel %vm219, %v194, 0
    %232 = vmatprep.subr.mxu0 0.0
    %233 = vmatpush1.msra.mxu0 0.0
    %234 = vmatprep.subr.mxu0 0.0
    %235 = vmatpush1.msra.mxu0 0.0
    %236 = vmatprep.subr.mxu0 0.0
    %237 = vmatpush1.msra.mxu0 0.0
    %238 = vmatprep.subr.mxu0 0.0
    %239 = vmatpush1.msra.mxu0 0.0
    %240 = vmatprep.subr.mxu0 0.0
    %241 = vmatpush1.msra.mxu0 0.0
    %242 = vmatprep.subr.mxu0 0.0
    %243 = vmatpush1.msra.mxu0 0.0
    %244 = vmatprep.subr.mxu0 0.0
    %245 = vmatpush1.msra.mxu0 0.0
    %246 = vmatprep.subr.mxu0 0.0
    %247 = vmatpush1.msra.mxu0 0.0
    %248 = vmatprep.subr.mxu0 0.0
    %249 = vmatpush1.msra.mxu0 0.0
    %250 = vmatprep.subr.mxu0 0.0
    %251 = vmatpush1.msra.mxu0 0.0
    %252 = vmatprep.subr.mxu0 0.0
    %253 = vmatpush1.msra.mxu0 0.0
    %254 = vmatprep.subr.mxu0 0.0
    %255 = vmatpush1.msra.mxu0 0.0
    %256 = vmatprep.subr.mxu0 0.0
    %257 = vmatpush1.msra.mxu0 %v190
    %258 = vmatprep.subr.mxu0 0.0
    %259 = vmatpush1.msra.mxu0 %v189
    %260 = vmatprep.subr.mxu0 0.0
    %261 = vmatpush1.msra.mxu0 %v188
    %262 = vmatprep.subr.mxu0 0.0
    %263 = vmatpush1.msra.mxu0 %v187
    %264 = vmatprep.subr.mxu0 0.0
    %265 = vmatpush2.msra.mxu0 0.0
    %266 = vmatprep.subr.mxu0 0.0
    %267 = vmatpush2.msra.mxu0 0.0
    %268 = vmatprep.subr.mxu0 0.0
    %269 = vmatpush2.msra.mxu0 0.0
    %270 = vmatprep.subr.mxu0 0.0
    %271 = vmatpush2.msra.mxu0 0.0
    %272 = vmatprep.subr.mxu0 0.0
    %273 = vmatpush2.msra.mxu0 0.0
    %274 = vmatprep.subr.mxu0 0.0
    %275 = vmatpush2.msra.mxu0 0.0
    %276 = vmatprep.subr.mxu0 0.0
    %277 = vmatpush2.msra.mxu0 0.0
    %278 = vmatprep.subr.mxu0 0.0
    %279 = vmatpush2.msra.mxu0 0.0
    %280 = vmatprep.subr.mxu0 0.0
    %281 = vmatpush2.msra.mxu0 0.0
    %282 = vmatprep.subr.mxu0 0.0
    %283 = vmatpush2.msra.mxu0 0.0
    %284 = vmatprep.subr.mxu0 0.0
    %285 = vmatpush2.msra.mxu0 0.0
    %286 = vmatprep.subr.mxu0 0.0
    %287 = vmatpush2.msra.mxu0 0.0
    %288 = vmatprep.subr.mxu0 0.0
    %289 = vmatpush2.msra.mxu0 0.0
    %290 = vmatprep.subr.mxu0 0.0
    %291 = vmatpush2.msra.mxu0 0.0
    %292 = vmatprep.subr.mxu0 0.0
    %293 = vmatpush2.msra.mxu0 0.0
    %294 = vmatprep.subr.mxu0 0.0
    %295 = vmatpush2.msra.mxu0 0.0
    %296 = vmatprep.mubr.f32.mxu0 0.0
    %297 = vmatmul.mubr.f32.gmra.mxu0 %v221
    %v298 = vpop.f32.mrf.mxu0
    %v299 = vadd.f32 %v202, %v298
    %v300 = vpop.f32.mrf.mxu0
    %301 = vmatprep.mubr.f32.mxu0 0.0
    %302 = vmatmul.mubr.f32.gmra.mxu0 %v224
    %v303 = vpop.f32.mrf.mxu0
    %v304 = vadd.f32 %v207, %v303
    %v305 = vpop.f32.mrf.mxu0
    %306 = vmatprep.mubr.f32.mxu0 0.0
    %307 = vmatmul.mubr.f32.gmra.mxu0 %v227
    %v308 = vpop.f32.mrf.mxu0
    %v309 = vadd.f32 %v212, %v308
    %v310 = vpop.f32.mrf.mxu0
    %311 = vmatprep.mubr.f32.mxu0 0.0
    %312 = vmatmul.mubr.f32.gmra.mxu0 %v230
    %v313 = vpop.f32.mrf.mxu0
    %v314 = vadd.f32 %v217, %v313
    %v315 = vpop.f32.mrf.mxu0
    %316 = vdwg.mxu0
    %v317 = vmax.f32 %v299, 0.0
    %v318 = vmax.f32 %v304, 0.0
    %v319 = vmax.f32 %v309, 0.0
    %v320 = vmax.f32 %v314, 0.0
    %v321 = vld [vmem:[%s5] sm:$0xff]
    %v322 = vld [vmem:[%s5 + $0x8] sm:$0xff]
    %v323 = vld [vmem:[%s5 + $0x10] sm:$0xff]
    %v324 = vld [vmem:[%s5 + $0x18] sm:$0xff]
    %326 = vset.pattern.permute.xlu0 0
    %327 = vperm.xlu0 %326, %v321
    %v328 = vpop.permute.xlu0 %327
    %331 = vset.pattern.permute.xlu0 0
    %332 = vperm.xlu0 %331, %v322
    %v333 = vpop.permute.xlu0 %332
    %336 = vset.pattern.permute.xlu0 0
    %337 = vperm.xlu0 %336, %v323
    %v338 = vpop.permute.xlu0 %337
    %341 = vset.pattern.permute.xlu0 0
    %342 = vperm.xlu0 %341, %v324
    %v343 = vpop.permute.xlu0 %342
    %v345 = vmul.f32 %v317, %v328
    %v346 = vmul.f32 %v318, %v333
    %v347 = vmul.f32 %v319, %v338
    %v348 = vmul.f32 %v320, %v343
    %vm349 = vcmask 523264
    %v350 = vsel %vm349, %v345, 0.0
    %v351 = vsel %vm349, %v346, 0.0
    %v352 = vadd.f32 %v350, %v351
    %v353 = vsel %vm349, %v347, 0.0
    %v354 = vadd.f32 %v352, %v353
    %v355 = vsel %vm349, %v348, 0.0
    %v356 = vadd.f32 %v354, %v355
    %v357 = vrot.slane %v356, 4
    %v358 = vadd.f32 %v356, %v357
    %v359 = vrot.slane %v358, 2
    %v360 = vadd.f32 %v358, %v359
    %v361 = vrot.slane %v360, 1
    %v362 = vadd.f32 %v360, %v361
    %v363 = vld [vmem:[#allocation2] sm:$0x1]
    %365 = vset.pattern.permute.xlu0 0
    %366 = vperm.xlu0 %365, %v363
    %v367 = vpop.permute.xlu0 %366
    %v369 = vlaneseq
    %v370 = vshrl.u32 %v369, 7
    %v371 = vsub.s32 0, %v370
    %v372 = vrot.slane %v367, %v371
    %v373 = vadd.f32 %v362, %v372
    %vm374 = vcmask 516096
    %375 = vst.msk [vmem:[#allocation3] sm:$0x1] %vm374, %v373
    // Predicated region
    $region30: #{reg_dnn_forward.1} parent=1 // pred_check
      _
    $region31: #{reg_dnn_forward.1} parent=1 // pred_check_branch
      %377 = sbr.rel (0) target = $region33
    $region32: #{reg_dnn_forward.1} parent=1 // pred_region
      %s379 = ssub.s32 16, 16
      %380 = vsyncadd [#allocation4], %s379
      %s382 = sshll.u32 [#allocation3], 4
      %s383 = int_to_ptr.vmem [resolvable:$true] %s382
      %385 = dma.vmem_to_hbm [thread:$0]  %s383, 16, %s7, [#allocation4]
    $region33: #{reg_dnn_forward.1} parent=1 // pred_fallthru
      _
    // Predicated region
    $region34: #{reg_dnn_forward.1} parent=1 // pred_check
      _
    $region35: #{reg_dnn_forward.1} parent=1 // pred_check_branch
      %387 = sbr.rel (0) target = $region37
    $region36: #{reg_dnn_forward.1} parent=1 // pred_region
      %388 = dma.done [#allocation4], 16
    $region37: #{reg_dnn_forward.1} parent=1 // pred_fallthru
      _
    %389 = vsyncpa [#allocation4], 1

</llo_original>
